<compile_context>
chip_gen: v7x
topology: tpu7x:2x2x1
jax: 0.10.0
libtpu: 0.0.40
codegen_flags: <defaults>
</compile_context>

<pallas_src>
import functools
import math

import jax
import jax.numpy as jnp
from jax import lax
from jax.experimental import pallas as pl
from jax.experimental.pallas import tpu as pltpu

_ENTROPY_CONST = 0.5 * (1.0 + math.log(2.0 * math.pi))  # Normal entropy constant


def _round_up(x, m):
    return ((x + m - 1) // m) * m


# ---------------------------------------------------------------------------
# Fully fused MLP forward kernel (single invocation, everything in VMEM).
#
# Inputs (all padded, lane-dense):
#   x1 [Mp, Kin_p], eps [Mp, Nout_p],
#   w_in_t [Kin_p, W_p], b_in [1, W_p],
#   (w_h_t [W_p, W_p], b_h [1, W_p]) * num_hidden,
#   w_out_t [W_p, Nout_p], b_out [1, Nout_p],
#   w_musig_t [Nout_p, 2*Nout_p], b_musig [1, 2*Nout_p],
#   bn4_scale [1, Nout_p], bn4_shift [1, Nout_p]
# Outputs:
#   intervention [Mp, Nout_p], x [Mp, Nout_p], dist [1, 1]
# ---------------------------------------------------------------------------
def _fused_mlp_kernel(*refs, num_hidden, threshold, n_rows, n_cols):
    x1_ref, eps_ref, w_in_ref, b_in_ref = refs[:4]
    rest = refs[4:]
    hidden_refs = [(rest[2 * i], rest[2 * i + 1]) for i in range(num_hidden)]
    rest = rest[2 * num_hidden:]
    (w_out_ref, b_out_ref, w_ms_ref, b_ms_ref, scale_ref, shift_ref,
     interv_ref, x_ref, dist_ref) = rest

    f32 = jnp.float32
    x1 = x1_ref[...]

    # fc_in + ReLU (dropout is identity in inference mode)
    h = jnp.dot(x1, w_in_ref[...], preferred_element_type=f32) + b_in_ref[...]
    h = jnp.maximum(h, 0.0)

    # hidden layers (num_hidden is a compile-time constant -> static unroll)
    for w_ref, b_ref in hidden_refs:
        h = jnp.dot(h, w_ref[...], preferred_element_type=f32) + b_ref[...]
        h = jnp.maximum(h, 0.0)

    # fc_out -> intervention; residual int_rois = x1 + intervention
    interv = jnp.dot(h, w_out_ref[...], preferred_element_type=f32) + b_out_ref[...]
    interv_ref[...] = interv.astype(interv_ref.dtype)
    int_rois = x1.astype(f32) + interv

    # merged fc1_mu / fc1_sig: one matmul with weights concatenated along N
    ms = jnp.dot(int_rois, w_ms_ref[...], preferred_element_type=f32) + b_ms_ref[...]
    n_out_p = ms.shape[1] // 2          # static, 128-aligned lane split
    mu = ms[:, :n_out_p]
    z = ms[:, n_out_p:]

    # sigma = softplus(z) + 1e-8  (numerically stable form)
    sigma = jnp.maximum(z, 0.0) + jnp.log(1.0 + jnp.exp(-jnp.abs(z))) + 1e-8

    # dist = mean(relu(threshold - Normal(mu, sigma).entropy())) over the REAL
    # (unpadded) batch x n_outputs block; padded rows/cols are masked out.
    entropy = _ENTROPY_CONST + jnp.log(sigma)
    hinge = jnp.maximum(threshold - entropy, 0.0)
    row_ids = lax.broadcasted_iota(jnp.int32, hinge.shape, 0)
    col_ids = lax.broadcasted_iota(jnp.int32, hinge.shape, 1)
    hinge = jnp.where((row_ids < n_rows) & (col_ids < n_cols), hinge, 0.0)
    dist_ref[...] = (jnp.sum(hinge, axis=(0, 1), keepdims=True)
                     * (1.0 / float(n_rows * n_cols)))

    # rsample + eval-mode BatchNorm1d (pre-folded scale/shift) + SiLU
    sample = mu + sigma * eps_ref[...].astype(f32)
    zz = sample * scale_ref[...] + shift_ref[...]
    x_ref[...] = (zz * jax.nn.sigmoid(zz)).astype(x_ref.dtype)


# ---------------------------------------------------------------------------
# One-time parameter preparation: transpose, zero-pad to lane-dense layouts,
# merge mu/sig weights, fold BatchNorm4 (eval mode).
# ---------------------------------------------------------------------------
def prepare_params(params, *, n_inputs, n_outputs, dtype=jnp.float32):
    assert n_inputs == n_outputs, \
        "residual x1 + intervention requires n_inputs == n_outputs"
    kin_p = _round_up(n_inputs, 128)
    nout_p = _round_up(n_outputs, 128)
    width = params["w_in"].shape[0]
    w_p = _round_up(width, 128)

    def pad_wt(w, kp, np_):
        # w: [N, K] (PyTorch nn.Linear layout) -> padded, pre-transposed [Kp, Np]
        return jnp.pad(w.T.astype(dtype),
                       ((0, kp - w.shape[1]), (0, np_ - w.shape[0])))

    def pad_b(b, np_):
        return jnp.pad(b.astype(jnp.float32), (0, np_ - b.shape[0])).reshape(1, np_)

    prep = {
        "w_in": pad_wt(params["w_in"], kin_p, w_p),
        "b_in": pad_b(params["b_in"], w_p),
        "hidden": [(pad_wt(w, w_p, w_p), pad_b(b, w_p))
                   for (w, b) in params["hidden"]],
        "w_out": pad_wt(params["w_out"], w_p, nout_p),
        "b_out": pad_b(params["b_out"], nout_p),
        "w_musig": jnp.concatenate(
            [pad_wt(params["w_mu"], nout_p, nout_p),
             pad_wt(params["w_sig"], nout_p, nout_p)], axis=1),
        "b_musig": jnp.concatenate(
            [pad_b(params["b_mu"], nout_p), pad_b(params["b_sig"], nout_p)], axis=1),
    }
    # eval-mode BatchNorm1d fold: z = sample*scale + shift
    scale = params["bn4_gamma"] / jnp.sqrt(params["bn4_var"] + 1e-5)
    shift = params["bn4_beta"] - params["bn4_mean"] * scale
    prep["bn4_scale"] = pad_b(scale, nout_p)
    prep["bn4_shift"] = pad_b(shift, nout_p)
    return prep


# ---------------------------------------------------------------------------
# Full MLP forward (inference semantics) — one pallas_call.
# ---------------------------------------------------------------------------
@functools.partial(jax.jit, static_argnames=("n_outputs", "threshold"))
def mlp_forward(x1, eps, prep, *, n_outputs, threshold=0.9):
    # TODO(synk): nn.Dropout is identity in inference; training-mode masks not implemented.
    # TODO(synk): bn_type == 1 branch (bn1/bn2/bn3 + swish1/2/3) not implemented; demo uses bn_type = 0.
    # TODO(synk): eval-mode BatchNorm1d (running stats) only; training-mode batch stats not implemented.
    batch, n_inputs = x1.shape
    kin_p = prep["w_in"].shape[0]
    w_p = prep["w_in"].shape[1]
    nout_p = prep["w_out"].shape[1]
    mp = _round_up(batch, 8)
    num_hidden = len(prep["hidden"])

    x1_p = jnp.pad(x1, ((0, mp - batch), (0, kin_p - n_inputs)))
    eps_p = jnp.pad(eps, ((0, mp - batch), (0, nout_p - n_outputs)))

    operands = [x1_p, eps_p, prep["w_in"], prep["b_in"]]
    for (w, b) in prep["hidden"]:
        operands += [w, b]
    operands += [prep["w_out"], prep["b_out"], prep["w_musig"], prep["b_musig"],
                 prep["bn4_scale"], prep["bn4_shift"]]

    # TODO(synk): this fused whole-network kernel assumes the padded working set
    # fits in VMEM; for large widths/batches switch back to a tiled (M,N,K) grid.
    in_bytes = sum(int(o.size) * o.dtype.itemsize for o in operands)
    out_bytes = (2 * mp * nout_p + 1) * 4
    assert in_bytes + out_bytes < 32 * 1024 * 1024, "working set too large for fused kernel"

    flops = 2 * mp * (kin_p * w_p + num_hidden * w_p * w_p
                      + w_p * nout_p + nout_p * 2 * nout_p)
    cost = pl.CostEstimate(
        flops=flops,
        transcendentals=4 * mp * nout_p,          # exp, log, 2x sigmoid
        bytes_accessed=in_bytes + out_bytes,
    )

    kernel = functools.partial(
        _fused_mlp_kernel,
        num_hidden=num_hidden,
        threshold=float(threshold),
        n_rows=int(batch),
        n_cols=int(n_outputs),
    )

    vmem_spec = pl.BlockSpec(memory_space=pltpu.MemorySpace.VMEM)
    interv_p, x_p, dist = pl.pallas_call(
        kernel,
        out_shape=(
            jax.ShapeDtypeStruct((mp, nout_p), x1.dtype),      # intervention (padded)
            jax.ShapeDtypeStruct((mp, nout_p), jnp.float32),   # sampled / BN / SiLU output
            jax.ShapeDtypeStruct((1, 1), jnp.float32),         # dist
        ),
        in_specs=[vmem_spec] * len(operands),
        out_specs=(vmem_spec, vmem_spec, vmem_spec),
        compiler_params=pltpu.CompilerParams(
            vmem_limit_bytes=32 * 1024 * 1024),
        cost_estimate=cost,
    )(*operands)

    # Only the user-visible outputs are sliced back to real shapes.
    return (interv_p[:batch, :n_outputs], dist[0, 0], x_p[:batch, :n_outputs])


# ---------------------------------------------------------------------------
# Pure-JAX reference
# ---------------------------------------------------------------------------
def _reference_forward(x1, params, eps, *, threshold=0.9):
    h = jnp.maximum(x1 @ params["w_in"].T + params["b_in"], 0.0)
    for (w, b) in params["hidden"]:
        h = jnp.maximum(h @ w.T + b, 0.0)
    intervention = h @ params["w_out"].T + params["b_out"]
    int_rois = x1 + intervention
    x_mu = int_rois @ params["w_mu"].T + params["b_mu"]
    x_sig_pre = int_rois @ params["w_sig"].T + params["b_sig"]
    sigma = jax.nn.softplus(x_sig_pre) + 1e-8
    entropy = 0.5 * (1.0 + jnp.log(2.0 * jnp.pi)) + jnp.log(sigma)
    dist = jnp.mean(jnp.maximum(threshold - entropy, 0.0))
    sample = x_mu + sigma * eps
    z = ((sample - params["bn4_mean"]) / jnp.sqrt(params["bn4_var"] + 1e-5)
         * params["bn4_gamma"] + params["bn4_beta"])
    x_out = z * jax.nn.sigmoid(z)
    return intervention, dist, x_out


if __name__ == "__main__":
    n_inputs = 16        # residual x1 + intervention requires n_outputs == n_inputs
    n_outputs = 16
    mlp_width = 32
    mlp_depth = 3        # -> mlp_depth - 2 = 1 hidden layer
    batch = 4

    root = jax.random.PRNGKey(0)
    ks = jax.random.split(root, 10)

    def linear_init(k, fan_out, fan_in):
        kw, kb = jax.random.split(k)
        lim = fan_in ** -0.5
        w = jax.random.uniform(kw, (fan_out, fan_in), jnp.float32, -lim, lim)
        b = jax.random.uniform(kb, (fan_out,), jnp.float32, -lim, lim)
        return w, b

    w_in, b_in = linear_init(ks[0], mlp_width, n_inputs)
    hidden = [linear_init(ks[1 + i], mlp_width, mlp_width)
              for i in range(mlp_depth - 2)]
    w_out, b_out = linear_init(ks[4], n_outputs, mlp_width)
    w_mu, b_mu = linear_init(ks[5], n_outputs, n_outputs)
    w_sig, b_sig = linear_init(ks[6], n_outputs, n_outputs)

    kbn1, kbn2, kbn3, kbn4 = jax.random.split(ks[7], 4)
    params = dict(
        w_in=w_in, b_in=b_in, hidden=hidden, w_out=w_out, b_out=b_out,
        w_mu=w_mu, b_mu=b_mu, w_sig=w_sig, b_sig=b_sig,
        bn4_gamma=1.0 + 0.1 * jax.random.normal(kbn1, (n_outputs,), jnp.float32),
        bn4_beta=0.1 * jax.random.normal(kbn2, (n_outputs,), jnp.float32),
        bn4_mean=0.1 * jax.random.normal(kbn3, (n_outputs,), jnp.float32),
        bn4_var=jax.random.uniform(kbn4, (n_outputs,), jnp.float32, 0.5, 1.5),
    )

    x1 = jax.random.normal(ks[8], (batch, n_inputs), jnp.float32)
    eps = jax.random.normal(ks[9], (batch, n_outputs), jnp.float32)  # rsample noise

    # One-time weight relayout (padding / transpose / mu-sig merge / BN fold).
    prep = prepare_params(params, n_inputs=n_inputs, n_outputs=n_outputs)
    prep = jax.tree_util.tree_map(jax.block_until_ready, prep)

    interv, dist, x_out = mlp_forward(x1, eps, prep, n_outputs=n_outputs)
    interv, dist, x_out = jax.block_until_ready((interv, dist, x_out))

    ref_i, ref_d, ref_x = _reference_forward(x1, params, eps)
    assert jnp.allclose(interv, ref_i, atol=1e-4, rtol=1e-4), "intervention mismatch"
    assert jnp.allclose(dist, ref_d, atol=1e-5, rtol=1e-4), "dist mismatch"
    assert jnp.allclose(x_out, ref_x, atol=1e-4, rtol=1e-4), "sampled output mismatch"

    print("KERNEL_OK")
</pallas_src>

<mosaic_0001>
module attributes {stable_mosaic.version = 11 : i64} {
  func.func @_fused_mlp_kernel(%arg0: memref<8x128xf32, #tpu.memory_space<vmem>>, %arg1: memref<8x128xf32, #tpu.memory_space<vmem>>, %arg2: memref<128x128xf32, #tpu.memory_space<vmem>>, %arg3: memref<1x128xf32, #tpu.memory_space<vmem>>, %arg4: memref<128x128xf32, #tpu.memory_space<vmem>>, %arg5: memref<1x128xf32, #tpu.memory_space<vmem>>, %arg6: memref<128x128xf32, #tpu.memory_space<vmem>>, %arg7: memref<1x128xf32, #tpu.memory_space<vmem>>, %arg8: memref<128x256xf32, #tpu.memory_space<vmem>>, %arg9: memref<1x256xf32, #tpu.memory_space<vmem>>, %arg10: memref<1x128xf32, #tpu.memory_space<vmem>>, %arg11: memref<1x128xf32, #tpu.memory_space<vmem>>, %arg12: memref<8x128xf32, #tpu.memory_space<vmem>>, %arg13: memref<8x128xf32, #tpu.memory_space<vmem>>, %arg14: memref<1x1xf32, #tpu.memory_space<vmem>>) attributes {dimension_semantics = [], scalar_prefetch = 0 : i64, scratch_operands = 0 : i64, tpu.core_type = #tpu.core_type<tc>} {
    %c0 = arith.constant 0 : index
    %c0_0 = arith.constant 0 : index
    %0 = vector.load %arg0[%c0, %c0_0] : memref<8x128xf32, #tpu.memory_space<vmem>>, vector<8x128xf32>
    %c0_1 = arith.constant 0 : index
    %c0_2 = arith.constant 0 : index
    %1 = vector.load %arg2[%c0_1, %c0_2] : memref<128x128xf32, #tpu.memory_space<vmem>>, vector<128x128xf32>
    %cst = arith.constant dense<0.000000e+00> : vector<8x128xf32>
    %2 = tpu.matmul %0, %1, %cst {dimension_numbers = #tpu.dot_dimension_numbers<[1], [0], [0], [1], [0, 0, 1, 1], [], []>} : vector<8x128xf32>, vector<128x128xf32>, vector<8x128xf32> -> vector<8x128xf32>
    %c0_3 = arith.constant 0 : index
    %c0_4 = arith.constant 0 : index
    %3 = vector.load %arg3[%c0_3, %c0_4] : memref<1x128xf32, #tpu.memory_space<vmem>>, vector<1x128xf32>
    %4 = vector.broadcast %3 : vector<1x128xf32> to vector<8x128xf32>
    %5 = arith.addf %2, %4 : vector<8x128xf32>
    %cst_5 = arith.constant 0.000000e+00 : f32
    %6 = vector.broadcast %cst_5 : f32 to vector<8x128xf32>
    %7 = arith.maximumf %5, %6 : vector<8x128xf32>
    %c0_6 = arith.constant 0 : index
    %c0_7 = arith.constant 0 : index
    %8 = vector.load %arg4[%c0_6, %c0_7] : memref<128x128xf32, #tpu.memory_space<vmem>>, vector<128x128xf32>
    %cst_8 = arith.constant dense<0.000000e+00> : vector<8x128xf32>
    %9 = tpu.matmul %7, %8, %cst_8 {dimension_numbers = #tpu.dot_dimension_numbers<[1], [0], [0], [1], [0, 0, 1, 1], [], []>} : vector<8x128xf32>, vector<128x128xf32>, vector<8x128xf32> -> vector<8x128xf32>
    %c0_9 = arith.constant 0 : index
    %c0_10 = arith.constant 0 : index
    %10 = vector.load %arg5[%c0_9, %c0_10] : memref<1x128xf32, #tpu.memory_space<vmem>>, vector<1x128xf32>
    %11 = vector.broadcast %10 : vector<1x128xf32> to vector<8x128xf32>
    %12 = arith.addf %9, %11 : vector<8x128xf32>
    %cst_11 = arith.constant 0.000000e+00 : f32
    %13 = vector.broadcast %cst_11 : f32 to vector<8x128xf32>
    %14 = arith.maximumf %12, %13 : vector<8x128xf32>
    %c0_12 = arith.constant 0 : index
    %c0_13 = arith.constant 0 : index
    %15 = vector.load %arg6[%c0_12, %c0_13] : memref<128x128xf32, #tpu.memory_space<vmem>>, vector<128x128xf32>
    %cst_14 = arith.constant dense<0.000000e+00> : vector<8x128xf32>
    %16 = tpu.matmul %14, %15, %cst_14 {dimension_numbers = #tpu.dot_dimension_numbers<[1], [0], [0], [1], [0, 0, 1, 1], [], []>} : vector<8x128xf32>, vector<128x128xf32>, vector<8x128xf32> -> vector<8x128xf32>
    %c0_15 = arith.constant 0 : index
    %c0_16 = arith.constant 0 : index
    %17 = vector.load %arg7[%c0_15, %c0_16] : memref<1x128xf32, #tpu.memory_space<vmem>>, vector<1x128xf32>
    %18 = vector.broadcast %17 : vector<1x128xf32> to vector<8x128xf32>
    %19 = arith.addf %16, %18 : vector<8x128xf32>
    %c0_17 = arith.constant 0 : index
    %c0_18 = arith.constant 0 : index
    %20 = vector.load %arg12[%c0_17, %c0_18] : memref<8x128xf32, #tpu.memory_space<vmem>>, vector<8x128xf32>
    tpu.vector_store %arg12[%c0_17, %c0_18], %19 {strides = array<i32>} : memref<8x128xf32, #tpu.memory_space<vmem>>, vector<8x128xf32>,
    %21 = arith.addf %0, %19 : vector<8x128xf32>
    %c0_19 = arith.constant 0 : index
    %c0_20 = arith.constant 0 : index
    %22 = vector.load %arg8[%c0_19, %c0_20] : memref<128x256xf32, #tpu.memory_space<vmem>>, vector<128x256xf32>
    %cst_21 = arith.constant dense<0.000000e+00> : vector<8x256xf32>
    %23 = tpu.matmul %21, %22, %cst_21 {dimension_numbers = #tpu.dot_dimension_numbers<[1], [0], [0], [1], [0, 0, 1, 1], [], []>} : vector<8x128xf32>, vector<128x256xf32>, vector<8x256xf32> -> vector<8x256xf32>
    %c0_22 = arith.constant 0 : index
    %c0_23 = arith.constant 0 : index
    %24 = vector.load %arg9[%c0_22, %c0_23] : memref<1x256xf32, #tpu.memory_space<vmem>>, vector<1x256xf32>
    %25 = vector.broadcast %24 : vector<1x256xf32> to vector<8x256xf32>
    %26 = arith.addf %23, %25 : vector<8x256xf32>
    %27 = vector.extract_strided_slice %26 {offsets = [0, 0], sizes = [8, 128], strides = [1, 1]} : vector<8x256xf32> to vector<8x128xf32>
    %28 = vector.extract_strided_slice %26 {offsets = [0, 128], sizes = [8, 128], strides = [1, 1]} : vector<8x256xf32> to vector<8x128xf32>
    %cst_24 = arith.constant 0.000000e+00 : f32
    %29 = vector.broadcast %cst_24 : f32 to vector<8x128xf32>
    %30 = arith.maximumf %28, %29 : vector<8x128xf32>
    %31 = math.absf %28 : vector<8x128xf32>
    %cst_25 = arith.constant 0.000000e+00 : f32
    %32 = vector.broadcast %cst_25 : f32 to vector<8x128xf32>
    %33 = arith.subf %32, %31 : vector<8x128xf32>
    %34 = math.exp %33 : vector<8x128xf32>
    %cst_26 = arith.constant 1.000000e+00 : f32
    %35 = vector.broadcast %cst_26 : f32 to vector<8x128xf32>
    %36 = arith.addf %35, %34 : vector<8x128xf32>
    %37 = math.log %36 : vector<8x128xf32>
    %38 = arith.addf %30, %37 : vector<8x128xf32>
    %cst_27 = arith.constant 9.99999993E-9 : f32
    %39 = vector.broadcast %cst_27 : f32 to vector<8x128xf32>
    %40 = arith.addf %38, %39 : vector<8x128xf32>
    %41 = math.log %40 : vector<8x128xf32>
    %cst_28 = arith.constant 1.41893852 : f32
    %42 = vector.broadcast %cst_28 : f32 to vector<8x128xf32>
    %43 = arith.addf %42, %41 : vector<8x128xf32>
    %cst_29 = arith.constant 0.899999976 : f32
    %44 = vector.broadcast %cst_29 : f32 to vector<8x128xf32>
    %45 = arith.subf %44, %43 : vector<8x128xf32>
    %cst_30 = arith.constant 0.000000e+00 : f32
    %46 = vector.broadcast %cst_30 : f32 to vector<8x128xf32>
    %47 = arith.maximumf %45, %46 : vector<8x128xf32>
    %48 = tpu.iota {dimensions = array<i32: 0>} : vector<8x128xi32>
    %49 = tpu.iota {dimensions = array<i32: 1>} : vector<8x128xi32>
    %c4_i32 = arith.constant 4 : i32
    %50 = vector.broadcast %c4_i32 : i32 to vector<8x128xi32>
    %51 = arith.cmpi slt, %48, %50 : vector<8x128xi32>
    %c16_i32 = arith.constant 16 : i32
    %52 = vector.broadcast %c16_i32 : i32 to vector<8x128xi32>
    %53 = arith.cmpi slt, %49, %52 : vector<8x128xi32>
    %54 = arith.andi %51, %53 : vector<8x128xi1>
    %cst_31 = arith.constant 0.000000e+00 : f32
    %55 = vector.broadcast %cst_31 : f32 to vector<8x128xf32>
    %56 = arith.select %54, %47, %55 : vector<8x128xi1>, vector<8x128xf32>
    %57 = vector.shape_cast %56 : vector<8x128xf32> to vector<1x8x128xf32>
    %cst_32 = arith.constant dense<0.000000e+00> : vector<1xf32>
    %58 = vector.multi_reduction <add>, %57, %cst_32 [1, 2] : vector<1x8x128xf32> to vector<1xf32>
    %59 = vector.shape_cast %58 : vector<1xf32> to vector<1x1x1xf32>
    %60 = vector.extract %59[0, 0, 0] : f32 from vector<1x1x1xf32>
    %61 = vector.broadcast %60 : f32 to vector<1x1xf32>
    %cst_33 = arith.constant 1.562500e-02 : f32
    %62 = vector.broadcast %cst_33 : f32 to vector<1x1xf32>
    %63 = arith.mulf %61, %62 : vector<1x1xf32>
    %c0_34 = arith.constant 0 : index
    %c0_35 = arith.constant 0 : index
    %64 = vector.load %arg14[%c0_34, %c0_35] : memref<1x1xf32, #tpu.memory_space<vmem>>, vector<1x1xf32>
    tpu.vector_store %arg14[%c0_34, %c0_35], %63 {strides = array<i32>} : memref<1x1xf32, #tpu.memory_space<vmem>>, vector<1x1xf32>,
    %c0_36 = arith.constant 0 : index
    %c0_37 = arith.constant 0 : index
    %65 = vector.load %arg1[%c0_36, %c0_37] : memref<8x128xf32, #tpu.memory_space<vmem>>, vector<8x128xf32>
    %66 = arith.mulf %40, %65 : vector<8x128xf32>
    %67 = arith.addf %27, %66 : vector<8x128xf32>
    %c0_38 = arith.constant 0 : index
    %c0_39 = arith.constant 0 : index
    %68 = vector.load %arg10[%c0_38, %c0_39] : memref<1x128xf32, #tpu.memory_space<vmem>>, vector<1x128xf32>
    %69 = vector.broadcast %68 : vector<1x128xf32> to vector<8x128xf32>
    %70 = arith.mulf %67, %69 : vector<8x128xf32>
    %c0_40 = arith.constant 0 : index
    %c0_41 = arith.constant 0 : index
    %71 = vector.load %arg11[%c0_40, %c0_41] : memref<1x128xf32, #tpu.memory_space<vmem>>, vector<1x128xf32>
    %72 = vector.broadcast %71 : vector<1x128xf32> to vector<8x128xf32>
    %73 = arith.addf %70, %72 : vector<8x128xf32>
    %74 = arith.negf %73 : vector<8x128xf32>
    %75 = math.exp %74 : vector<8x128xf32>
    %cst_42 = arith.constant 1.000000e+00 : f32
    %76 = vector.broadcast %cst_42 : f32 to vector<8x128xf32>
    %77 = arith.addf %76, %75 : vector<8x128xf32>
    %78 = arith.divf %76, %77 : vector<8x128xf32>
    %79 = arith.mulf %73, %78 : vector<8x128xf32>
    %c0_43 = arith.constant 0 : index
    %c0_44 = arith.constant 0 : index
    %80 = vector.load %arg13[%c0_43, %c0_44] : memref<8x128xf32, #tpu.memory_space<vmem>>, vector<8x128xf32>
    tpu.vector_store %arg13[%c0_43, %c0_44], %79 {strides = array<i32>} : memref<8x128xf32, #tpu.memory_space<vmem>>, vector<8x128xf32>,
    return
  }
}

</mosaic_0001>

<llo_original>
// kernel: mlp_forward.1
$region0: #{mlp_forward.1}
  #allocation0 [shape = 'u32[]', space=smem, size = 0x4, offset = 0x4, fixed_abs, tag = 'smem constant byte address 0x4 - core index']
  #allocation1 [shape = 'u32[144,128]{1,0:T(1,128)}', space=vmem, size = 0x12000, scoped, tag = 'internal scratch']
  %s0 = inlined_call_operand.vmem [shape: f32[8,128], index: 0, kind: input, shape index: {}]
  %s1 = inlined_call_operand.vmem [shape: f32[8,128], index: 1, kind: input, shape index: {}]
  %s2 = inlined_call_operand.hbm [shape: f32[128,128], index: 2, kind: input, shape index: {}]
  %s3 = inlined_call_operand.vmem [shape: f32[1,128], index: 3, kind: input, shape index: {}]
  %s4 = inlined_call_operand.hbm [shape: f32[128,128], index: 4, kind: input, shape index: {}]
  %s5 = inlined_call_operand.vmem [shape: f32[1,128], index: 5, kind: input, shape index: {}]
  %s6 = inlined_call_operand.hbm [shape: f32[128,128], index: 6, kind: input, shape index: {}]
  %s7 = inlined_call_operand.vmem [shape: f32[1,128], index: 7, kind: input, shape index: {}]
  %s8 = inlined_call_operand.hbm [shape: f32[128,256], index: 8, kind: input, shape index: {}]
  %s9 = inlined_call_operand.vmem [shape: f32[1,256], index: 9, kind: input, shape index: {}]
  %s10 = inlined_call_operand.vmem [shape: f32[1,128], index: 10, kind: input, shape index: {}]
  %s11 = inlined_call_operand.vmem [shape: f32[1,128], index: 11, kind: input, shape index: {}]
  %s12 = inlined_call_operand.vmem [shape: f32[8,128], index: 12, kind: output, shape index: {0}]
  %s13 = inlined_call_operand.vmem [shape: f32[8,128], index: 13, kind: output, shape index: {1}]
  %s14 = inlined_call_operand.hbm [shape: f32[1,1], index: 14, kind: output, shape index: {2}]
  %15 = xla_tuple %s12, %s13, %s14
  %s16 = sld [smem:[#allocation0]]
  $region90: #{mlp_forward.1} parent=0
    _
  %s18 = ssub.s32 1, %s16
  %s19 = scalar_select 0, %s18, %s16
  $region1: #{mlp_forward.1} parent=0
    #allocation2 [shape = 'u8[65536]{0}', space=vmem, size = 0x10000, scoped, tag = 'input window, operand 2, single buffered']
    #allocation3 [shape = 's32[1]{0}', space=sflag, size = 0x4, scoped, tag = 'scoped memory for mlp_forward.1']
    #allocation4 [shape = 's32[1]{0}', space=sflag, size = 0x4, scoped, tag = 'scoped memory for mlp_forward.1']
    #allocation5 [shape = 'u8[65536]{0}', space=vmem, size = 0x10000, scoped, tag = 'input window, operand 4, single buffered']
    #allocation6 [shape = 's32[1]{0}', space=sflag, size = 0x4, scoped, tag = 'scoped memory for mlp_forward.1']
    #allocation7 [shape = 'u8[65536]{0}', space=vmem, size = 0x10000, scoped, tag = 'input window, operand 6, single buffered']
    #allocation8 [shape = 'u8[131072]{0}', space=vmem, size = 0x20000, scoped, tag = 'input window, operand 8, single buffered']
    #allocation9 [shape = 's32[1]{0}', space=sflag, size = 0x4, scoped, tag = 'scoped memory for mlp_forward.1']
    #allocation10 [shape = 'u8[512]{0}', space=vmem, size = 0x400, scoped, tag = 'output window, operand 2, single buffered']
    %20 = vsyncpa [#allocation3], 0
    %21 = vsyncpa [#allocation6], 0
    %22 = vsyncpa [#allocation9], 0
    %23 = vsyncpa [#allocation4], 0
    // Predicated region
    $region2: #{mlp_forward.1} parent=1 // pred_check
      _
    $region3: #{mlp_forward.1} parent=1 // pred_check_branch
      %25 = sbr.rel (0) target = $region5
    $region4: #{mlp_forward.1} parent=1 // pred_region
      _
    $region5: #{mlp_forward.1} parent=1 // pred_fallthru
      _
    // Predicated region
    $region6: #{mlp_forward.1} parent=1 // pred_check
      _
    $region7: #{mlp_forward.1} parent=1 // pred_check_branch
      %27 = sbr.rel (0) target = $region9
    $region8: #{mlp_forward.1} parent=1 // pred_region
      _
    $region9: #{mlp_forward.1} parent=1 // pred_fallthru
      _
    // Predicated region
    $region10: #{mlp_forward.1} parent=1 // pred_check
      _
    $region11: #{mlp_forward.1} parent=1 // pred_check_branch
      %29 = sbr.rel (0) target = $region13
    $region12: #{mlp_forward.1} parent=1 // pred_region
      %s31 = ssub.s32 2048, 2048
      %32 = vsyncadd [#allocation3], %s31
      %s33 = sshll.u32 [#allocation2], 4
      %s34 = int_to_ptr.vmem [resolvable:$true] %s33
      %39 = dma.hbm_to_vmem [thread:$0]  %s2, 2048, %s34, [#allocation3], 128, 128, 8
    $region13: #{mlp_forward.1} parent=1 // pred_fallthru
      _
    // Predicated region
    $region14: #{mlp_forward.1} parent=1 // pred_check
      _
    $region15: #{mlp_forward.1} parent=1 // pred_check_branch
      %41 = sbr.rel (0) target = $region17
    $region16: #{mlp_forward.1} parent=1 // pred_region
      _
    $region17: #{mlp_forward.1} parent=1 // pred_fallthru
      _
    // Predicated region
    $region18: #{mlp_forward.1} parent=1 // pred_check
      _
    $region19: #{mlp_forward.1} parent=1 // pred_check_branch
      %43 = sbr.rel (0) target = $region21
    $region20: #{mlp_forward.1} parent=1 // pred_region
      %s45 = ssub.s32 2048, 2048
      %46 = vsyncadd [#allocation6], %s45
      %s47 = sshll.u32 [#allocation5], 4
      %s48 = int_to_ptr.vmem [resolvable:$true] %s47
      %53 = dma.hbm_to_vmem [thread:$0]  %s4, 2048, %s48, [#allocation6], 128, 128, 8
    $region21: #{mlp_forward.1} parent=1 // pred_fallthru
      _
    // Predicated region
    $region22: #{mlp_forward.1} parent=1 // pred_check
      _
    $region23: #{mlp_forward.1} parent=1 // pred_check_branch
      %55 = sbr.rel (0) target = $region25
    $region24: #{mlp_forward.1} parent=1 // pred_region
      _
    $region25: #{mlp_forward.1} parent=1 // pred_fallthru
      _
    // Predicated region
    $region26: #{mlp_forward.1} parent=1 // pred_check
      _
    $region27: #{mlp_forward.1} parent=1 // pred_check_branch
      %57 = sbr.rel (0) target = $region29
    $region28: #{mlp_forward.1} parent=1 // pred_region
      %s59 = ssub.s32 2048, 2048
      %60 = vsyncadd [#allocation6], %s59
      %s61 = sshll.u32 [#allocation7], 4
      %s62 = int_to_ptr.vmem [resolvable:$true] %s61
      %67 = dma.hbm_to_vmem [thread:$0]  %s6, 2048, %s62, [#allocation6], 128, 128, 8
    $region29: #{mlp_forward.1} parent=1 // pred_fallthru
      _
    // Predicated region
    $region30: #{mlp_forward.1} parent=1 // pred_check
      _
    $region31: #{mlp_forward.1} parent=1 // pred_check_branch
      %69 = sbr.rel (0) target = $region33
    $region32: #{mlp_forward.1} parent=1 // pred_region
      _
    $region33: #{mlp_forward.1} parent=1 // pred_fallthru
      _
    // Predicated region
    $region34: #{mlp_forward.1} parent=1 // pred_check
      _
    $region35: #{mlp_forward.1} parent=1 // pred_check_branch
      %71 = sbr.rel (0) target = $region37
    $region36: #{mlp_forward.1} parent=1 // pred_region
      %s73 = ssub.s32 4096, 4096
      %74 = vsyncadd [#allocation9], %s73
      %s75 = sshll.u32 [#allocation8], 4
      %s76 = int_to_ptr.vmem [resolvable:$true] %s75
      %81 = dma.hbm_to_vmem [thread:$0]  %s8, 4096, %s76, [#allocation9], 256, 256, 16
    $region37: #{mlp_forward.1} parent=1 // pred_fallthru
      _
    // Predicated region
    $region38: #{mlp_forward.1} parent=1 // pred_check
      _
    $region39: #{mlp_forward.1} parent=1 // pred_check_branch
      %83 = sbr.rel (0) target = $region41
    $region40: #{mlp_forward.1} parent=1 // pred_region
      _
    $region41: #{mlp_forward.1} parent=1 // pred_fallthru
      _
    // Predicated region
    $region42: #{mlp_forward.1} parent=1 // pred_check
      _
    $region43: #{mlp_forward.1} parent=1 // pred_check_branch
      %85 = sbr.rel (0) target = $region45
    $region44: #{mlp_forward.1} parent=1 // pred_region
      _
    $region45: #{mlp_forward.1} parent=1 // pred_fallthru
      _
    // Predicated region
    $region46: #{mlp_forward.1} parent=1 // pred_check
      _
    $region47: #{mlp_forward.1} parent=1 // pred_check_branch
      %87 = sbr.rel (0) target = $region49
    $region48: #{mlp_forward.1} parent=1 // pred_region
      _
    $region49: #{mlp_forward.1} parent=1 // pred_fallthru
      _
    // Predicated region
    $region50: #{mlp_forward.1} parent=1 // pred_check
      _
    $region51: #{mlp_forward.1} parent=1 // pred_check_branch
      %89 = sbr.rel (0) target = $region53
    $region52: #{mlp_forward.1} parent=1 // pred_region
      %90 = dma.done [#allocation3], 2048
    $region53: #{mlp_forward.1} parent=1 // pred_fallthru
      _
    // Predicated region
    $region54: #{mlp_forward.1} parent=1 // pred_check
      _
    $region55: #{mlp_forward.1} parent=1 // pred_check_branch
      %92 = sbr.rel (0) target = $region57
    $region56: #{mlp_forward.1} parent=1 // pred_region
      %93 = dma.done [#allocation6], 2048
    $region57: #{mlp_forward.1} parent=1 // pred_fallthru
      _
    // Predicated region
    $region58: #{mlp_forward.1} parent=1 // pred_check
      _
    $region59: #{mlp_forward.1} parent=1 // pred_check_branch
      %95 = sbr.rel (0) target = $region61
    $region60: #{mlp_forward.1} parent=1 // pred_region
      %96 = dma.done [#allocation6], 2048
    $region61: #{mlp_forward.1} parent=1 // pred_fallthru
      _
    // Predicated region
    $region62: #{mlp_forward.1} parent=1 // pred_check
      _
    $region63: #{mlp_forward.1} parent=1 // pred_check_branch
      %98 = sbr.rel (0) target = $region65
    $region64: #{mlp_forward.1} parent=1 // pred_region
      %99 = dma.done [#allocation9], 4096
    $region65: #{mlp_forward.1} parent=1 // pred_fallthru
      _
    %v100 = vld [vmem:[%s0] sm:$0xff]
    %v101 = vld [vmem:[#allocation2] sm:$0xff]
    %v102 = vld [vmem:[#allocation2 + $0x8] sm:$0xff]
    %v103 = vld [vmem:[#allocation2 + $0x10] sm:$0xff]
    %v104 = vld [vmem:[#allocation2 + $0x18] sm:$0xff]
    %v105 = vld [vmem:[#allocation2 + $0x20] sm:$0xff]
    %v106 = vld [vmem:[#allocation2 + $0x28] sm:$0xff]
    %v107 = vld [vmem:[#allocation2 + $0x30] sm:$0xff]
    %v108 = vld [vmem:[#allocation2 + $0x38] sm:$0xff]
    %v109 = vld [vmem:[#allocation2 + $0x40] sm:$0xff]
    %v110 = vld [vmem:[#allocation2 + $0x48] sm:$0xff]
    %v111 = vld [vmem:[#allocation2 + $0x50] sm:$0xff]
    %v112 = vld [vmem:[#allocation2 + $0x58] sm:$0xff]
    %v113 = vld [vmem:[#allocation2 + $0x60] sm:$0xff]
    %v114 = vld [vmem:[#allocation2 + $0x68] sm:$0xff]
    %v115 = vld [vmem:[#allocation2 + $0x70] sm:$0xff]
    %v116 = vld [vmem:[#allocation2 + $0x78] sm:$0xff]
    %v117 = vld [vmem:[%s3] sm:$0x1]
    %v119 = vlaneseq
    %v120 = vshrl.u32 %v119, 7
    %v121 = vsub.s32 0, %v120
    %v122 = vrot.slane %v117, %v121
    %124 = vmatprep.subr.mxu0 0.0
    %125 = vmatpush1.msra.mxu0 %v101
    %126 = vmatprep.subr.mxu0 0.0
    %127 = vmatpush1.msra.mxu0 %v102
    %128 = vmatprep.subr.mxu0 0.0
    %129 = vmatpush1.msra.mxu0 %v103
    %130 = vmatprep.subr.mxu0 0.0
    %131 = vmatpush1.msra.mxu0 %v104
    %132 = vmatprep.subr.mxu0 0.0
    %133 = vmatpush1.msra.mxu0 %v105
    %134 = vmatprep.subr.mxu0 0.0
    %135 = vmatpush1.msra.mxu0 %v106
    %136 = vmatprep.subr.mxu0 0.0
    %137 = vmatpush1.msra.mxu0 %v107
    %138 = vmatprep.subr.mxu0 0.0
    %139 = vmatpush1.msra.mxu0 %v108
    %140 = vmatprep.subr.mxu0 0.0
    %141 = vmatpush1.msra.mxu0 %v109
    %142 = vmatprep.subr.mxu0 0.0
    %143 = vmatpush1.msra.mxu0 %v110
    %144 = vmatprep.subr.mxu0 0.0
    %145 = vmatpush1.msra.mxu0 %v111
    %146 = vmatprep.subr.mxu0 0.0
    %147 = vmatpush1.msra.mxu0 %v112
    %148 = vmatprep.subr.mxu0 0.0
    %149 = vmatpush1.msra.mxu0 %v113
    %150 = vmatprep.subr.mxu0 0.0
    %151 = vmatpush1.msra.mxu0 %v114
    %152 = vmatprep.subr.mxu0 0.0
    %153 = vmatpush1.msra.mxu0 %v115
    %154 = vmatprep.subr.mxu0 0.0
    %155 = vmatpush1.msra.mxu0 %v116
    %156 = vmatprep.subr.mxu0 0.0
    %157 = vmatpush1.msra.mxu0 0.0
    %158 = vmatprep.subr.mxu0 0.0
    %159 = vmatpush1.msra.mxu0 0.0
    %160 = vmatprep.subr.mxu0 0.0
    %161 = vmatpush1.msra.mxu0 0.0
    %162 = vmatprep.subr.mxu0 0.0
    %163 = vmatpush1.msra.mxu0 0.0
    %164 = vmatprep.subr.mxu0 0.0
    %165 = vmatpush1.msra.mxu0 0.0
    %166 = vmatprep.subr.mxu0 0.0
    %167 = vmatpush1.msra.mxu0 0.0
    %168 = vmatprep.subr.mxu0 0.0
    %169 = vmatpush1.msra.mxu0 0.0
    %170 = vmatprep.subr.mxu0 0.0
    %171 = vmatpush1.msra.mxu0 0.0
    %172 = vmatprep.subr.mxu0 0.0
    %173 = vmatpush1.msra.mxu0 0.0
    %174 = vmatprep.subr.mxu0 0.0
    %175 = vmatpush1.msra.mxu0 0.0
    %176 = vmatprep.subr.mxu0 0.0
    %177 = vmatpush1.msra.mxu0 0.0
    %178 = vmatprep.subr.mxu0 0.0
    %179 = vmatpush1.msra.mxu0 0.0
    %180 = vmatprep.subr.mxu0 0.0
    %181 = vmatpush1.msra.mxu0 0.0
    %182 = vmatprep.subr.mxu0 0.0
    %183 = vmatpush1.msra.mxu0 0.0
    %184 = vmatprep.subr.mxu0 0.0
    %185 = vmatpush1.msra.mxu0 0.0
    %186 = vmatprep.subr.mxu0 0.0
    %187 = vmatpush1.msra.mxu0 0.0
    %188 = vmatprep.mubr.f32.mxu0 0.0
    %189 = vmatmul.mubr.f32.gmra.mrb[0].mxu0 %v100
    %v190 = vpop.f32.mrb[0].mxu0
    %v191 = vadd.f32 %v122, %v190
    %v192 = vpop.f32.mrb[0].mxu0
    %193 = vdwg.mxu0
    %v194 = vmax.f32 %v191, 0.0
    %v195 = vld [vmem:[#allocation5] sm:$0xff]
    %v196 = vld [vmem:[#allocation5 + $0x8] sm:$0xff]
    %v197 = vld [vmem:[#allocation5 + $0x10] sm:$0xff]
    %v198 = vld [vmem:[#allocation5 + $0x18] sm:$0xff]
    %v199 = vld [vmem:[#allocation5 + $0x20] sm:$0xff]
    %v200 = vld [vmem:[#allocation5 + $0x28] sm:$0xff]
    %v201 = vld [vmem:[#allocation5 + $0x30] sm:$0xff]
    %v202 = vld [vmem:[#allocation5 + $0x38] sm:$0xff]
    %v203 = vld [vmem:[#allocation5 + $0x40] sm:$0xff]
    %v204 = vld [vmem:[#allocation5 + $0x48] sm:$0xff]
    %v205 = vld [vmem:[#allocation5 + $0x50] sm:$0xff]
    %v206 = vld [vmem:[#allocation5 + $0x58] sm:$0xff]
    %v207 = vld [vmem:[#allocation5 + $0x60] sm:$0xff]
    %v208 = vld [vmem:[#allocation5 + $0x68] sm:$0xff]
    %v209 = vld [vmem:[#allocation5 + $0x70] sm:$0xff]
    %v210 = vld [vmem:[#allocation5 + $0x78] sm:$0xff]
    %v211 = vld [vmem:[%s5] sm:$0x1]
    %v213 = vlaneseq
    %v214 = vshrl.u32 %v213, 7
    %v215 = vsub.s32 0, %v214
    %v216 = vrot.slane %v211, %v215
    %218 = vmatprep.subr.mxu0 0.0
    %219 = vmatpush1.msra.mxu0 %v195
    %220 = vmatprep.subr.mxu0 0.0
    %221 = vmatpush1.msra.mxu0 %v196
    %222 = vmatprep.subr.mxu0 0.0
    %223 = vmatpush1.msra.mxu0 %v197
    %224 = vmatprep.subr.mxu0 0.0
    %225 = vmatpush1.msra.mxu0 %v198
    %226 = vmatprep.subr.mxu0 0.0
    %227 = vmatpush1.msra.mxu0 %v199
    %228 = vmatprep.subr.mxu0 0.0
    %229 = vmatpush1.msra.mxu0 %v200
    %230 = vmatprep.subr.mxu0 0.0
    %231 = vmatpush1.msra.mxu0 %v201
    %232 = vmatprep.subr.mxu0 0.0
    %233 = vmatpush1.msra.mxu0 %v202
    %234 = vmatprep.subr.mxu0 0.0
    %235 = vmatpush1.msra.mxu0 %v203
    %236 = vmatprep.subr.mxu0 0.0
    %237 = vmatpush1.msra.mxu0 %v204
    %238 = vmatprep.subr.mxu0 0.0
    %239 = vmatpush1.msra.mxu0 %v205
    %240 = vmatprep.subr.mxu0 0.0
    %241 = vmatpush1.msra.mxu0 %v206
    %242 = vmatprep.subr.mxu0 0.0
    %243 = vmatpush1.msra.mxu0 %v207
    %244 = vmatprep.subr.mxu0 0.0
    %245 = vmatpush1.msra.mxu0 %v208
    %246 = vmatprep.subr.mxu0 0.0
    %247 = vmatpush1.msra.mxu0 %v209
    %248 = vmatprep.subr.mxu0 0.0
    %249 = vmatpush1.msra.mxu0 %v210
    %250 = vmatprep.subr.mxu0 0.0
    %251 = vmatpush1.msra.mxu0 0.0
    %252 = vmatprep.subr.mxu0 0.0
    %253 = vmatpush1.msra.mxu0 0.0
    %254 = vmatprep.subr.mxu0 0.0
    %255 = vmatpush1.msra.mxu0 0.0
    %256 = vmatprep.subr.mxu0 0.0
    %257 = vmatpush1.msra.mxu0 0.0
    %258 = vmatprep.subr.mxu0 0.0
    %259 = vmatpush1.msra.mxu0 0.0
    %260 = vmatprep.subr.mxu0 0.0
    %261 = vmatpush1.msra.mxu0 0.0
    %262 = vmatprep.subr.mxu0 0.0
    %263 = vmatpush1.msra.mxu0 0.0
    %264 = vmatprep.subr.mxu0 0.0
    %265 = vmatpush1.msra.mxu0 0.0
    %266 = vmatprep.subr.mxu0 0.0
    %267 = vmatpush1.msra.mxu0 0.0
    %268 = vmatprep.subr.mxu0 0.0
    %269 = vmatpush1.msra.mxu0 0.0
    %270 = vmatprep.subr.mxu0 0.0
    %271 = vmatpush1.msra.mxu0 0.0
    %272 = vmatprep.subr.mxu0 0.0
    %273 = vmatpush1.msra.mxu0 0.0
    %274 = vmatprep.subr.mxu0 0.0
    %275 = vmatpush1.msra.mxu0 0.0
    %276 = vmatprep.subr.mxu0 0.0
    %277 = vmatpush1.msra.mxu0 0.0
    %278 = vmatprep.subr.mxu0 0.0
    %279 = vmatpush1.msra.mxu0 0.0
    %280 = vmatprep.subr.mxu0 0.0
    %281 = vmatpush1.msra.mxu0 0.0
    %282 = vmatprep.mubr.f32.mxu0 0.0
    %283 = vmatmul.mubr.f32.gmra.mrb[0].mxu0 %v194
    %v284 = vpop.f32.mrb[0].mxu0
    %v285 = vadd.f32 %v216, %v284
    %v286 = vpop.f32.mrb[0].mxu0
    %287 = vdwg.mxu0
    %v288 = vmax.f32 %v285, 0.0
    %v289 = vld [vmem:[#allocation7] sm:$0xff]
    %v290 = vld [vmem:[#allocation7 + $0x8] sm:$0xff]
    %v291 = vld [vmem:[#allocation7 + $0x10] sm:$0xff]
    %v292 = vld [vmem:[#allocation7 + $0x18] sm:$0xff]
    %v293 = vld [vmem:[#allocation7 + $0x20] sm:$0xff]
    %v294 = vld [vmem:[#allocation7 + $0x28] sm:$0xff]
    %v295 = vld [vmem:[#allocation7 + $0x30] sm:$0xff]
    %v296 = vld [vmem:[#allocation7 + $0x38] sm:$0xff]
    %v297 = vld [vmem:[#allocation7 + $0x40] sm:$0xff]
    %v298 = vld [vmem:[#allocation7 + $0x48] sm:$0xff]
    %v299 = vld [vmem:[#allocation7 + $0x50] sm:$0xff]
    %v300 = vld [vmem:[#allocation7 + $0x58] sm:$0xff]
    %v301 = vld [vmem:[#allocation7 + $0x60] sm:$0xff]
    %v302 = vld [vmem:[#allocation7 + $0x68] sm:$0xff]
    %v303 = vld [vmem:[#allocation7 + $0x70] sm:$0xff]
    %v304 = vld [vmem:[#allocation7 + $0x78] sm:$0xff]
    %v305 = vld [vmem:[%s7] sm:$0x1]
    %v307 = vlaneseq
    %v308 = vshrl.u32 %v307, 7
    %v309 = vsub.s32 0, %v308
    %v310 = vrot.slane %v305, %v309
    %312 = vmatprep.subr.mxu0 0.0
    %313 = vmatpush1.msra.mxu0 %v289
    %314 = vmatprep.subr.mxu0 0.0
    %315 = vmatpush1.msra.mxu0 %v290
    %316 = vmatprep.subr.mxu0 0.0
    %317 = vmatpush1.msra.mxu0 %v291
    %318 = vmatprep.subr.mxu0 0.0
    %319 = vmatpush1.msra.mxu0 %v292
    %320 = vmatprep.subr.mxu0 0.0
    %321 = vmatpush1.msra.mxu0 %v293
    %322 = vmatprep.subr.mxu0 0.0
    %323 = vmatpush1.msra.mxu0 %v294
    %324 = vmatprep.subr.mxu0 0.0
    %325 = vmatpush1.msra.mxu0 %v295
    %326 = vmatprep.subr.mxu0 0.0
    %327 = vmatpush1.msra.mxu0 %v296
    %328 = vmatprep.subr.mxu0 0.0
    %329 = vmatpush1.msra.mxu0 %v297
    %330 = vmatprep.subr.mxu0 0.0
    %331 = vmatpush1.msra.mxu0 %v298
    %332 = vmatprep.subr.mxu0 0.0
    %333 = vmatpush1.msra.mxu0 %v299
    %334 = vmatprep.subr.mxu0 0.0
    %335 = vmatpush1.msra.mxu0 %v300
    %336 = vmatprep.subr.mxu0 0.0
    %337 = vmatpush1.msra.mxu0 %v301
    %338 = vmatprep.subr.mxu0 0.0
    %339 = vmatpush1.msra.mxu0 %v302
    %340 = vmatprep.subr.mxu0 0.0
    %341 = vmatpush1.msra.mxu0 %v303
    %342 = vmatprep.subr.mxu0 0.0
    %343 = vmatpush1.msra.mxu0 %v304
    %344 = vmatprep.subr.mxu0 0.0
    %345 = vmatpush1.msra.mxu0 0.0
    %346 = vmatprep.subr.mxu0 0.0
    %347 = vmatpush1.msra.mxu0 0.0
    %348 = vmatprep.subr.mxu0 0.0
    %349 = vmatpush1.msra.mxu0 0.0
    %350 = vmatprep.subr.mxu0 0.0
    %351 = vmatpush1.msra.mxu0 0.0
    %352 = vmatprep.subr.mxu0 0.0
    %353 = vmatpush1.msra.mxu0 0.0
    %354 = vmatprep.subr.mxu0 0.0
    %355 = vmatpush1.msra.mxu0 0.0
    %356 = vmatprep.subr.mxu0 0.0
    %357 = vmatpush1.msra.mxu0 0.0
    %358 = vmatprep.subr.mxu0 0.0
    %359 = vmatpush1.msra.mxu0 0.0
    %360 = vmatprep.subr.mxu0 0.0
    %361 = vmatpush1.msra.mxu0 0.0
    %362 = vmatprep.subr.mxu0 0.0
    %363 = vmatpush1.msra.mxu0 0.0
    %364 = vmatprep.subr.mxu0 0.0
    %365 = vmatpush1.msra.mxu0 0.0
    %366 = vmatprep.subr.mxu0 0.0
    %367 = vmatpush1.msra.mxu0 0.0
    %368 = vmatprep.subr.mxu0 0.0
    %369 = vmatpush1.msra.mxu0 0.0
    %370 = vmatprep.subr.mxu0 0.0
    %371 = vmatpush1.msra.mxu0 0.0
    %372 = vmatprep.subr.mxu0 0.0
    %373 = vmatpush1.msra.mxu0 0.0
    %374 = vmatprep.subr.mxu0 0.0
    %375 = vmatpush1.msra.mxu0 0.0
    %376 = vmatprep.mubr.f32.mxu0 0.0
    %377 = vmatmul.mubr.f32.gmra.mrb[0].mxu0 %v288
    %v378 = vpop.f32.mrb[0].mxu0
    %v379 = vadd.f32 %v310, %v378
    %v380 = vpop.f32.mrb[0].mxu0
    %381 = vdwg.mxu0
    %382 = vst [vmem:[%s12] sm:$0xff] %v379
    %v383 = vadd.f32 %v100, %v379
    %v384 = vld [vmem:[#allocation8] sm:$0xff]
    %v385 = vld [vmem:[#allocation8 + $0x8] sm:$0xff]
    %v386 = vld [vmem:[#allocation8 + $0x10] sm:$0xff]
    %v387 = vld [vmem:[#allocation8 + $0x18] sm:$0xff]
    %v388 = vld [vmem:[#allocation8 + $0x20] sm:$0xff]
    %v389 = vld [vmem:[#allocation8 + $0x28] sm:$0xff]
    %v390 = vld [vmem:[#allocation8 + $0x30] sm:$0xff]
    %v391 = vld [vmem:[#allocation8 + $0x38] sm:$0xff]
    %v392 = vld [vmem:[#allocation8 + $0x40] sm:$0xff]
    %v393 = vld [vmem:[#allocation8 + $0x48] sm:$0xff]
    %v394 = vld [vmem:[#allocation8 + $0x50] sm:$0xff]
    %v395 = vld [vmem:[#allocation8 + $0x58] sm:$0xff]
    %v396 = vld [vmem:[#allocation8 + $0x60] sm:$0xff]
    %v397 = vld [vmem:[#allocation8 + $0x68] sm:$0xff]
    %v398 = vld [vmem:[#allocation8 + $0x70] sm:$0xff]
    %v399 = vld [vmem:[#allocation8 + $0x78] sm:$0xff]
    %v400 = vld [vmem:[#allocation8 + $0x80] sm:$0xff]
    %v401 = vld [vmem:[#allocation8 + $0x88] sm:$0xff]
    %v402 = vld [vmem:[#allocation8 + $0x90] sm:$0xff]
    %v403 = vld [vmem:[#allocation8 + $0x98] sm:$0xff]
    %v404 = vld [vmem:[#allocation8 + $0xa0] sm:$0xff]
    %v405 = vld [vmem:[#allocation8 + $0xa8] sm:$0xff]
    %v406 = vld [vmem:[#allocation8 + $0xb0] sm:$0xff]
    %v407 = vld [vmem:[#allocation8 + $0xb8] sm:$0xff]
    %v408 = vld [vmem:[#allocation8 + $0xc0] sm:$0xff]
    %v409 = vld [vmem:[#allocation8 + $0xc8] sm:$0xff]
    %v410 = vld [vmem:[#allocation8 + $0xd0] sm:$0xff]
    %v411 = vld [vmem:[#allocation8 + $0xd8] sm:$0xff]
    %v412 = vld [vmem:[#allocation8 + $0xe0] sm:$0xff]
    %v413 = vld [vmem:[#allocation8 + $0xe8] sm:$0xff]
    %v414 = vld [vmem:[#allocation8 + $0xf0] sm:$0xff]
    %v415 = vld [vmem:[#allocation8 + $0xf8] sm:$0xff]
    %v416 = vld [vmem:[%s9] sm:$0x3]
    %v418 = vlaneseq
    %v419 = vshrl.u32 %v418, 7
    %v420 = vsub.s32 0, %v419
    %v421 = vrot.slane %v416, %v420
    %v422 = vlaneseq
    %v423 = vshrl.u32 %v422, 7
    %v424 = vsub.s32 1, %v423
    %v425 = vrot.slane %v416, %v424
    %428 = vmatprep.subr.mxu0 %v385
    %429 = vmatpush1.msra.mxu0 %v384
    %430 = vmatprep.subr.mxu0 %v387
    %431 = vmatpush1.msra.mxu0 %v386
    %432 = vmatprep.subr.mxu0 %v389
    %433 = vmatpush1.msra.mxu0 %v388
    %434 = vmatprep.subr.mxu0 %v391
    %435 = vmatpush1.msra.mxu0 %v390
    %436 = vmatprep.subr.mxu0 %v393
    %437 = vmatpush1.msra.mxu0 %v392
    %438 = vmatprep.subr.mxu0 %v395
    %439 = vmatpush1.msra.mxu0 %v394
    %440 = vmatprep.subr.mxu0 %v397
    %441 = vmatpush1.msra.mxu0 %v396
    %442 = vmatprep.subr.mxu0 %v399
    %443 = vmatpush1.msra.mxu0 %v398
    %444 = vmatprep.subr.mxu0 %v401
    %445 = vmatpush1.msra.mxu0 %v400
    %446 = vmatprep.subr.mxu0 %v403
    %447 = vmatpush1.msra.mxu0 %v402
    %448 = vmatprep.subr.mxu0 %v405
    %449 = vmatpush1.msra.mxu0 %v404
    %450 = vmatprep.subr.mxu0 %v407
    %451 = vmatpush1.msra.mxu0 %v406
    %452 = vmatprep.subr.mxu0 %v409
    %453 = vmatpush1.msra.mxu0 %v408
    %454 = vmatprep.subr.mxu0 %v411
    %455 = vmatpush1.msra.mxu0 %v410
    %456 = vmatprep.subr.mxu0 %v413
    %457 = vmatpush1.msra.mxu0 %v412
    %458 = vmatprep.subr.mxu0 %v415
    %459 = vmatpush1.msra.mxu0 %v414
    %460 = vmatprep.subr.mxu0 0.0
    %461 = vmatpush1.msra.mxu0 0.0
    %462 = vmatprep.subr.mxu0 0.0
    %463 = vmatpush1.msra.mxu0 0.0
    %464 = vmatprep.subr.mxu0 0.0
    %465 = vmatpush1.msra.mxu0 0.0
    %466 = vmatprep.subr.mxu0 0.0
    %467 = vmatpush1.msra.mxu0 0.0
    %468 = vmatprep.subr.mxu0 0.0
    %469 = vmatpush1.msra.mxu0 0.0
    %470 = vmatprep.subr.mxu0 0.0
    %471 = vmatpush1.msra.mxu0 0.0
    %472 = vmatprep.subr.mxu0 0.0
    %473 = vmatpush1.msra.mxu0 0.0
    %474 = vmatprep.subr.mxu0 0.0
    %475 = vmatpush1.msra.mxu0 0.0
    %476 = vmatprep.subr.mxu0 0.0
    %477 = vmatpush1.msra.mxu0 0.0
    %478 = vmatprep.subr.mxu0 0.0
    %479 = vmatpush1.msra.mxu0 0.0
    %480 = vmatprep.subr.mxu0 0.0
    %481 = vmatpush1.msra.mxu0 0.0
    %482 = vmatprep.subr.mxu0 0.0
    %483 = vmatpush1.msra.mxu0 0.0
    %484 = vmatprep.subr.mxu0 0.0
    %485 = vmatpush1.msra.mxu0 0.0
    %486 = vmatprep.subr.mxu0 0.0
    %487 = vmatpush1.msra.mxu0 0.0
    %488 = vmatprep.subr.mxu0 0.0
    %489 = vmatpush1.msra.mxu0 0.0
    %490 = vmatprep.subr.mxu0 0.0
    %491 = vmatpush1.msra.mxu0 0.0
    %492 = vmatprep.mubr.f32.mxu0 0.0
    %493 = vmatmul.mubr.f32.gmra.mrb[0].mxu0 %v383
    %v494 = vpop.f32.mrb[0].mxu0
    %v495 = vadd.f32 %v421, %v494
    %v496 = vpop.f32.mrb[0].mxu0
    %v497 = vadd.f32 %v425, %v496
    %498 = vdwg.mxu0
    %v499 = vmax.f32 %v497, 0.0
    %v500 = vand.u32 2147483647, %v497
    %v501 = vsub.f32 0.0, %v500
    %v502 = vmul.f32 %v501, 1.442695
    %v503 = vpow.pop %v502
    %v504 = vadd.f32 %v503, 1.0
    %v505 = vlog2.pop %v504
    %v506 = vmul.f32 %v505, 0.6931472
    %v507 = vadd.f32 %v499, %v506
    %v508 = vadd.f32 %v507, 1e-08
    %v509 = vlog2.pop %v508
    %v510 = vmul.f32 %v509, 0.6931472
    %v511 = vadd.f32 %v510, 1.4189385
    %v512 = vsub.f32 0.9, %v511
    %v513 = vmax.f32 %v512, 0.0
    %v514 = vlaneseq
    %v515 = vshrl.u32 %v514, 7
    %v516 = vlaneseq
    %v517 = vand.u32 %v516, 127
    %vm518 = vcmp.lt.s32.totalorder %v515, 4
    %vm519 = vcmp.lt.s32.totalorder %v517, 16
    %vm520 = vmand %vm518, %vm519
    %v521 = vsel %vm520, %v513, 0.0
    %522 = vadd.xlane.f32.xlu0 %v521
    %v523 = vpop.xlane.xlu0 %522
    %v524 = vrot.slane %v523, 4
    %v525 = vadd.f32 %v523, %v524
    %v526 = vrot.slane %v525, 2
    %v527 = vadd.f32 %v525, %v526
    %v528 = vrot.slane %v527, 1
    %v529 = vadd.f32 %v527, %v528
    %s530 = vtos %v529
    %v531 = vstv %s530
    %v532 = vmul.f32 %v531, 0.015625
    %vm533 = vcmask 0
    %534 = vst.msk [vmem:[#allocation10] sm:$0x1] %vm533, %v532
    %v535 = vld [vmem:[%s1] sm:$0xff]
    %v536 = vmul.f32 %v508, %v535
    %v537 = vadd.f32 %v495, %v536
    %v538 = vld [vmem:[%s10] sm:$0x1]
    %v540 = vlaneseq
    %v541 = vshrl.u32 %v540, 7
    %v542 = vsub.s32 0, %v541
    %v543 = vrot.slane %v538, %v542
    %v545 = vmul.f32 %v537, %v543
    %v546 = vld [vmem:[%s11] sm:$0x1]
    %v548 = vlaneseq
    %v549 = vshrl.u32 %v548, 7
    %v550 = vsub.s32 0, %v549
    %v551 = vrot.slane %v546, %v550
    %v553 = vadd.f32 %v545, %v551
    %v554 = vxor.u32 %v553, 2147483648
    %v555 = vmul.f32 %v554, 1.442695
    %v556 = vpow.pop %v555
    %v557 = vadd.f32 %v556, 1.0
    %v558 = vrcp.pop %v557
    %v559 = vmul.f32 1.0, %v558
    %v560 = vmul.f32 %v553, %v559
    %561 = vst [vmem:[%s13] sm:$0xff] %v560
    // Predicated region
    $region66: #{mlp_forward.1} parent=1 // pred_check
      _
    $region67: #{mlp_forward.1} parent=1 // pred_check_branch
      %563 = sbr.rel (0) target = $region69
    $region68: #{mlp_forward.1} parent=1 // pred_region
      _
    $region69: #{mlp_forward.1} parent=1 // pred_fallthru
      _
    // Predicated region
    $region70: #{mlp_forward.1} parent=1 // pred_check
      _
    $region71: #{mlp_forward.1} parent=1 // pred_check_branch
      %565 = sbr.rel (0) target = $region73
    $region72: #{mlp_forward.1} parent=1 // pred_region
      _
    $region73: #{mlp_forward.1} parent=1 // pred_fallthru
      _
    // Predicated region
    $region74: #{mlp_forward.1} parent=1 // pred_check
      _
    $region75: #{mlp_forward.1} parent=1 // pred_check_branch
      %567 = sbr.rel (0) target = $region77
    $region76: #{mlp_forward.1} parent=1 // pred_region
      %s569 = ssub.s32 16, 16
      %570 = vsyncadd [#allocation4], %s569
      %s572 = sshll.u32 [#allocation10], 4
      %s573 = int_to_ptr.vmem [resolvable:$true] %s572
      %575 = dma.vmem_to_hbm [thread:$0]  %s573, 16, %s14, [#allocation4]
    $region77: #{mlp_forward.1} parent=1 // pred_fallthru
      _
    // Predicated region
    $region78: #{mlp_forward.1} parent=1 // pred_check
      _
    $region79: #{mlp_forward.1} parent=1 // pred_check_branch
      %577 = sbr.rel (0) target = $region81
    $region80: #{mlp_forward.1} parent=1 // pred_region
      _
    $region81: #{mlp_forward.1} parent=1 // pred_fallthru
      _
    // Predicated region
    $region82: #{mlp_forward.1} parent=1 // pred_check
      _
    $region83: #{mlp_forward.1} parent=1 // pred_check_branch
      %579 = sbr.rel (0) target = $region85
    $region84: #{mlp_forward.1} parent=1 // pred_region
      _
    $region85: #{mlp_forward.1} parent=1 // pred_fallthru
      _
    // Predicated region
    $region86: #{mlp_forward.1} parent=1 // pred_check
      _
    $region87: #{mlp_forward.1} parent=1 // pred_check_branch
      %581 = sbr.rel (0) target = $region89
    $region88: #{mlp_forward.1} parent=1 // pred_region
      %582 = dma.done [#allocation4], 16
    $region89: #{mlp_forward.1} parent=1 // pred_fallthru
      _
    %583 = vsyncpa [#allocation3], 1
    %584 = vsyncpa [#allocation6], 1
    %585 = vsyncpa [#allocation9], 1
    %586 = vsyncpa [#allocation4], 1

</llo_original>
